<compile_context>
chip_gen: v5e
topology: v5e:2x2
jax: 0.10.0
libtpu: 0.0.40
codegen_flags: <defaults>
</compile_context>

<pallas_src>
import functools
import math

import jax
import jax.numpy as jnp
from jax.experimental import pallas as pl
from jax.experimental.pallas import tpu as pltpu

EMBED_DIM = 32          # embedding_dim
MAX_POSITIONS = 10000
LN_EPS = 1e-5           # PyTorch nn.LayerNorm default


def _round_up(x, m):
    return ((x + m - 1) // m) * m


# -----------------------------------------------------------------------------
# Kernel (transposed / lane-dense layout: features on sublanes, batch on lanes)
# -----------------------------------------------------------------------------
def time_encoding_kernel(ts_ref, p_ref, out_ref, *, has_scale, d):
    D = d                 # 32
    D2 = 2 * D            # 64

    # ---- unpack packed params (static slices, hoisted once per grid step) ----
    # Layer-1 block: rows [0, 2D)
    w1t = p_ref[0:D2, 0:D]              # (2D, D)   = W1^T
    b1 = p_ref[0:D2, D:D + 1]           # (2D, 1)   bias column
    g1 = p_ref[0:D2, D + 1:D + 2]       # (2D, 1)   LN gamma
    be1 = p_ref[0:D2, D + 2:D + 3]      # (2D, 1)   LN beta
    # Layer-2 block + baked constants: rows [2D, 3D)
    w2t = p_ref[D2:D2 + D, 0:D2]        # (D, 2D)   = W2^T
    b2 = p_ref[D2:D2 + D, D2:D2 + 1]    # (D, 1)
    g2 = p_ref[D2:D2 + D, D2 + 1:D2 + 2]
    be2 = p_ref[D2:D2 + D, D2 + 2:D2 + 3]
    div_term = p_ref[D2:D2 + D, D2 + 3:D2 + 4]   # (D, 1)
    phase = p_ref[D2:D2 + D, D2 + 4:D2 + 5]      # (D, 1) = pi/2 on odd (cos) rows

    # ---- sinusoidal encoding pe[t]^T, computed on the fly --------------------
    # even rows: sin(t * div_term); odd rows: cos(t * dt) = sin(t * dt + pi/2)
    t_row = ts_ref[0:1, :]                       # (1, TB) float32 timesteps
    enc = jnp.sin(div_term * t_row + phase)      # (D, TB), single EUP pass
    if has_scale:
        enc = enc * ts_ref[1:2, :]               # scale_factor broadcast over D

    # ---- scale_transform MLP (all feature-major, lane-dense) -----------------
    # Linear(D -> 2D) + LayerNorm(2D)
    h = jnp.dot(w1t, enc, preferred_element_type=jnp.float32) + b1      # (2D,TB)
    mu1 = jnp.mean(h, axis=0, keepdims=True)                            # (1, TB)
    var1 = jnp.mean((h - mu1) ** 2, axis=0, keepdims=True)
    hn = (h - mu1) * jax.lax.rsqrt(var1 + LN_EPS) * g1 + be1
    # SiLU
    hs = hn * jax.nn.sigmoid(hn)

    # Linear(2D -> D) + LayerNorm(D)
    y = jnp.dot(w2t, hs, preferred_element_type=jnp.float32) + b2       # (D, TB)
    mu2 = jnp.mean(y, axis=0, keepdims=True)
    var2 = jnp.mean((y - mu2) ** 2, axis=0, keepdims=True)
    out_ref[...] = (y - mu2) * jax.lax.rsqrt(var2 + LN_EPS) * g2 + be2


# -----------------------------------------------------------------------------
# Param packing: one lane-dense (3D, 128) array
# -----------------------------------------------------------------------------
def pack_params(params, D=EMBED_DIM):
    """Pack 8 Linear/LayerNorm params + baked sinusoid constants into one
    lane-dense (3D, 128) f32 array (weights transposed, vectors as columns)."""
    w1, b1, g1, be1, w2, b2, g2, be2 = params
    D2 = 2 * D
    col = jnp.arange(D, dtype=jnp.float32)
    parity = jnp.mod(col, 2.0)                                     # 0 even, 1 odd
    div_term = jnp.exp((col - parity) * (-math.log(10000.0) / D))  # 10000^{-2i/D}
    phase = (math.pi / 2.0) * parity                               # +pi/2 on cos rows

    p = jnp.zeros((3 * D, 128), jnp.float32)
    # layer-1 block: rows [0, 2D)
    p = p.at[0:D2, 0:D].set(w1.T)                  # W1^T (2D, D)
    p = p.at[0:D2, D].set(b1.reshape(-1))
    p = p.at[0:D2, D + 1].set(g1.reshape(-1))
    p = p.at[0:D2, D + 2].set(be1.reshape(-1))
    # layer-2 block + constants: rows [2D, 3D)
    p = p.at[D2:D2 + D, 0:D2].set(w2.T)            # W2^T (D, 2D)
    p = p.at[D2:D2 + D, D2].set(b2.reshape(-1))
    p = p.at[D2:D2 + D, D2 + 1].set(g2.reshape(-1))
    p = p.at[D2:D2 + D, D2 + 2].set(be2.reshape(-1))
    p = p.at[D2:D2 + D, D2 + 3].set(div_term)
    p = p.at[D2:D2 + D, D2 + 4].set(phase)
    return p


# -----------------------------------------------------------------------------
# Wrapper: batched, gridded pallas_call
# -----------------------------------------------------------------------------
def time_encoding_pallas(t, scale_factor, packed, *, block_b=512):
    """t: int32 [B]; scale_factor: float32 [B] or None; returns float32 [B, D]."""
    B = int(t.shape[0])
    D = EMBED_DIM
    has_scale = scale_factor is not None

    # Batch tile (lane dim): multiple of 128, capped at block_b.
    b_pad_min = _round_up(max(B, 1), 128)
    tb = min(block_b, b_pad_min)
    b_pad = _round_up(B, tb)
    grid = (b_pad // tb,)

    # Pack t (and scale) as rows of an (8, b_pad) lane-dense slab.
    ts = jnp.zeros((8, b_pad), jnp.float32)
    ts = ts.at[0, :B].set(t.astype(jnp.float32))
    if has_scale:
        ts = ts.at[1, :B].set(scale_factor.astype(jnp.float32))

    kernel = functools.partial(time_encoding_kernel, has_scale=has_scale, d=D)

    out_t = pl.pallas_call(
        kernel,
        out_shape=jax.ShapeDtypeStruct((D, b_pad), jnp.float32),
        grid=grid,
        in_specs=[
            pl.BlockSpec((8, tb), lambda i: (0, i)),        # timesteps / scale
            pl.BlockSpec((3 * D, 128), lambda i: (0, 0)),   # packed params (resident)
        ],
        out_specs=pl.BlockSpec((D, tb), lambda i: (0, i)),
        compiler_params=pltpu.CompilerParams(
            dimension_semantics=("parallel",)),
    )(ts, packed)

    # (D, b_pad) lane-dense slab -> (B, D); transpose/slice is wrapper plumbing.
    return out_t[:, :B].T


# -----------------------------------------------------------------------------
# Reference + test harness
# -----------------------------------------------------------------------------
def init_params(key, D):
    k1, k2, k3, k4 = jax.random.split(key, 4)
    w1 = jax.random.normal(k1, (D, 2 * D), jnp.float32) * (1.0 / math.sqrt(D))
    b1 = jax.random.normal(k2, (1, 2 * D), jnp.float32) * 0.02
    g1 = jnp.ones((1, 2 * D), jnp.float32)
    be1 = jnp.zeros((1, 2 * D), jnp.float32)
    w2 = jax.random.normal(k3, (2 * D, D), jnp.float32) * (1.0 / math.sqrt(2 * D))
    b2 = jax.random.normal(k4, (1, D), jnp.float32) * 0.02
    g2 = jnp.ones((1, D), jnp.float32)
    be2 = jnp.zeros((1, D), jnp.float32)
    return (w1, b1, g1, be1, w2, b2, g2, be2)


def time_encoding_ref(t, scale_factor, params):
    """Pure-JAX reference mirroring the PyTorch forward (pe table + gather)."""
    D = EMBED_DIM
    w1, b1, g1, be1, w2, b2, g2, be2 = params
    pos = jnp.arange(MAX_POSITIONS, dtype=jnp.float32)[:, None]
    div_term = jnp.exp(jnp.arange(0, D, 2, dtype=jnp.float32)
                       * (-math.log(10000.0) / D))
    pe = jnp.zeros((MAX_POSITIONS, D), jnp.float32)
    pe = pe.at[:, 0::2].set(jnp.sin(pos * div_term))
    pe = pe.at[:, 1::2].set(jnp.cos(pos * div_term))
    x = pe[t]
    if scale_factor is not None:
        x = x * scale_factor.reshape(-1, 1)

    def ln(v, g, b):
        mu = jnp.mean(v, axis=-1, keepdims=True)
        var = jnp.mean((v - mu) ** 2, axis=-1, keepdims=True)
        return (v - mu) / jnp.sqrt(var + LN_EPS) * g + b

    hi = jax.lax.Precision.HIGHEST
    h = ln(jnp.dot(x, w1, precision=hi) + b1, g1, be1)
    h = h * jax.nn.sigmoid(h)
    return ln(jnp.dot(h, w2, precision=hi) + b2, g2, be2)


if __name__ == "__main__":
    key = jax.random.PRNGKey(0)
    kt, ks, kp, kt2, ks2 = jax.random.split(key, 5)

    params = init_params(kp, EMBED_DIM)
    packed = pack_params(params, EMBED_DIM)

    # Tolerance note: cos(x)=sin(x+pi/2) in f32 loses ~1e-3 of argument
    # precision on odd lanes at t ~ 1e4; after the MLP/LN this bounds the
    # output error at a couple of 1e-3, so compare at atol=5e-3 / rtol=1e-3.
    TOL = dict(atol=5e-3, rtol=1e-3)

    # --- small batch, with scale_factor --------------------------------------
    B = 8
    t = jax.random.randint(kt, (B,), 0, MAX_POSITIONS, dtype=jnp.int32)
    scale_factor = jax.random.uniform(ks, (B,), jnp.float32, 0.5, 2.0)
    out = jax.block_until_ready(time_encoding_pallas(t, scale_factor, packed))
    ref = time_encoding_ref(t, scale_factor, params)
    assert out.shape == (B, EMBED_DIM)
    assert jnp.allclose(out, ref, **TOL), \
        f"max abs err (B=8, scaled) {jnp.max(jnp.abs(out - ref))}"

    # --- small batch, scale_factor is None (specialized kernel) --------------
    out_ns = jax.block_until_ready(time_encoding_pallas(t, None, packed))
    ref_ns = time_encoding_ref(t, None, params)
    assert jnp.allclose(out_ns, ref_ns, **TOL), \
        f"max abs err (B=8, no scale) {jnp.max(jnp.abs(out_ns - ref_ns))}"

    # --- larger batch: exercises the parallel batch grid + padding -----------
    B2 = 1000   # non-multiple of the 512-column block -> 2 grid steps + padding
    t2 = jax.random.randint(kt2, (B2,), 0, MAX_POSITIONS, dtype=jnp.int32)
    sf2 = jax.random.uniform(ks2, (B2,), jnp.float32, 0.5, 2.0)
    out2 = jax.block_until_ready(time_encoding_pallas(t2, sf2, packed))
    ref2 = time_encoding_ref(t2, sf2, params)
    assert out2.shape == (B2, EMBED_DIM)
    assert jnp.allclose(out2, ref2, **TOL), \
        f"max abs err (B=1000, scaled) {jnp.max(jnp.abs(out2 - ref2))}"

    print("KERNEL_OK")
</pallas_src>

<mosaic_0001>
module attributes {stable_mosaic.version = 11 : i64} {
  func.func @time_encoding_kernel(%arg0: i32, %arg1: memref<8x128xf32, #tpu.memory_space<vmem>>, %arg2: memref<96x128xf32, #tpu.memory_space<vmem>>, %arg3: memref<32x128xf32, #tpu.memory_space<vmem>>) attributes {dimension_semantics = [#tpu.dimension_semantics<parallel>], iteration_bounds = array<i64: 1>, scalar_prefetch = 0 : i64, scratch_operands = 0 : i64, tpu.core_type = #tpu.core_type<tc>, window_params = [{transform_indices = @transform_0, window_bounds = array<i64: 8, 128>}, {pipeline_mode = #tpu.pipeline_mode<synchronous>, transform_indices = @transform_1, window_bounds = array<i64: 96, 128>}, {transform_indices = @transform_2, window_bounds = array<i64: 32, 128>}]} {
    %c0 = arith.constant 0 : index
    %c0_0 = arith.constant 0 : index
    %0 = vector.load %arg2[%c0, %c0_0] : memref<96x128xf32, #tpu.memory_space<vmem>>, vector<64x32xf32>
    %c0_1 = arith.constant 0 : index
    %c32 = arith.constant 32 : index
    %1 = vector.load %arg2[%c0_1, %c32] : memref<96x128xf32, #tpu.memory_space<vmem>>, vector<64x1xf32>
    %c0_2 = arith.constant 0 : index
    %c33 = arith.constant 33 : index
    %2 = vector.load %arg2[%c0_2, %c33] : memref<96x128xf32, #tpu.memory_space<vmem>>, vector<64x1xf32>
    %c0_3 = arith.constant 0 : index
    %c34 = arith.constant 34 : index
    %3 = vector.load %arg2[%c0_3, %c34] : memref<96x128xf32, #tpu.memory_space<vmem>>, vector<64x1xf32>
    %c64 = arith.constant 64 : index
    %c0_4 = arith.constant 0 : index
    %4 = vector.load %arg2[%c64, %c0_4] : memref<96x128xf32, #tpu.memory_space<vmem>>, vector<32x64xf32>
    %c64_5 = arith.constant 64 : index
    %c64_6 = arith.constant 64 : index
    %5 = vector.load %arg2[%c64_5, %c64_6] : memref<96x128xf32, #tpu.memory_space<vmem>>, vector<32x1xf32>
    %c64_7 = arith.constant 64 : index
    %c65 = arith.constant 65 : index
    %6 = vector.load %arg2[%c64_7, %c65] : memref<96x128xf32, #tpu.memory_space<vmem>>, vector<32x1xf32>
    %c64_8 = arith.constant 64 : index
    %c66 = arith.constant 66 : index
    %7 = vector.load %arg2[%c64_8, %c66] : memref<96x128xf32, #tpu.memory_space<vmem>>, vector<32x1xf32>
    %c64_9 = arith.constant 64 : index
    %c67 = arith.constant 67 : index
    %8 = vector.load %arg2[%c64_9, %c67] : memref<96x128xf32, #tpu.memory_space<vmem>>, vector<32x1xf32>
    %c64_10 = arith.constant 64 : index
    %c68 = arith.constant 68 : index
    %9 = vector.load %arg2[%c64_10, %c68] : memref<96x128xf32, #tpu.memory_space<vmem>>, vector<32x1xf32>
    %c0_11 = arith.constant 0 : index
    %c0_12 = arith.constant 0 : index
    %10 = vector.load %arg1[%c0_11, %c0_12] : memref<8x128xf32, #tpu.memory_space<vmem>>, vector<1x128xf32>
    %11 = vector.broadcast %8 : vector<32x1xf32> to vector<32x128xf32>
    %12 = vector.broadcast %10 : vector<1x128xf32> to vector<32x128xf32>
    %13 = arith.mulf %11, %12 : vector<32x128xf32>
    %14 = vector.broadcast %9 : vector<32x1xf32> to vector<32x128xf32>
    %15 = arith.addf %13, %14 : vector<32x128xf32>
    %16 = math.sin %15 : vector<32x128xf32>
    %c1 = arith.constant 1 : index
    %c0_13 = arith.constant 0 : index
    %17 = vector.load %arg1[%c1, %c0_13] : memref<8x128xf32, #tpu.memory_space<vmem>>, vector<1x128xf32>
    %18 = vector.broadcast %17 : vector<1x128xf32> to vector<32x128xf32>
    %19 = arith.mulf %16, %18 : vector<32x128xf32>
    %cst = arith.constant dense<0.000000e+00> : vector<64x128xf32>
    %20 = tpu.matmul %0, %19, %cst {dimension_numbers = #tpu.dot_dimension_numbers<[1], [0], [0], [1], [0, 0, 1, 1], [], []>} : vector<64x32xf32>, vector<32x128xf32>, vector<64x128xf32> -> vector<64x128xf32>
    %21 = vector.broadcast %1 : vector<64x1xf32> to vector<64x128xf32>
    %22 = arith.addf %20, %21 : vector<64x128xf32>
    %cst_14 = arith.constant dense<0.000000e+00> : vector<128xf32>
    %23 = vector.multi_reduction <add>, %22, %cst_14 [0] : vector<64x128xf32> to vector<128xf32>
    %24 = vector.shape_cast %23 : vector<128xf32> to vector<1x128xf32>
    %cst_15 = arith.constant 6.400000e+01 : f32
    %25 = vector.broadcast %cst_15 : f32 to vector<1x128xf32>
    %26 = arith.divf %24, %25 : vector<1x128xf32>
    %27 = vector.broadcast %26 : vector<1x128xf32> to vector<64x128xf32>
    %28 = arith.subf %22, %27 : vector<64x128xf32>
    %29 = arith.mulf %28, %28 : vector<64x128xf32>
    %cst_16 = arith.constant dense<0.000000e+00> : vector<128xf32>
    %30 = vector.multi_reduction <add>, %29, %cst_16 [0] : vector<64x128xf32> to vector<128xf32>
    %31 = vector.shape_cast %30 : vector<128xf32> to vector<1x128xf32>
    %cst_17 = arith.constant 6.400000e+01 : f32
    %32 = vector.broadcast %cst_17 : f32 to vector<1x128xf32>
    %33 = arith.divf %31, %32 : vector<1x128xf32>
    %34 = vector.broadcast %26 : vector<1x128xf32> to vector<64x128xf32>
    %35 = arith.subf %22, %34 : vector<64x128xf32>
    %cst_18 = arith.constant 9.99999974E-6 : f32
    %36 = vector.broadcast %cst_18 : f32 to vector<1x128xf32>
    %37 = arith.addf %33, %36 : vector<1x128xf32>
    %38 = math.rsqrt %37 : vector<1x128xf32>
    %39 = vector.broadcast %38 : vector<1x128xf32> to vector<64x128xf32>
    %40 = arith.mulf %35, %39 : vector<64x128xf32>
    %41 = vector.broadcast %2 : vector<64x1xf32> to vector<64x128xf32>
    %42 = arith.mulf %40, %41 : vector<64x128xf32>
    %43 = vector.broadcast %3 : vector<64x1xf32> to vector<64x128xf32>
    %44 = arith.addf %42, %43 : vector<64x128xf32>
    %45 = arith.negf %44 : vector<64x128xf32>
    %46 = math.exp %45 : vector<64x128xf32>
    %cst_19 = arith.constant 1.000000e+00 : f32
    %47 = vector.broadcast %cst_19 : f32 to vector<64x128xf32>
    %48 = arith.addf %47, %46 : vector<64x128xf32>
    %49 = arith.divf %47, %48 : vector<64x128xf32>
    %50 = arith.mulf %44, %49 : vector<64x128xf32>
    %cst_20 = arith.constant dense<0.000000e+00> : vector<32x128xf32>
    %51 = tpu.matmul %4, %50, %cst_20 {dimension_numbers = #tpu.dot_dimension_numbers<[1], [0], [0], [1], [0, 0, 1, 1], [], []>} : vector<32x64xf32>, vector<64x128xf32>, vector<32x128xf32> -> vector<32x128xf32>
    %52 = vector.broadcast %5 : vector<32x1xf32> to vector<32x128xf32>
    %53 = arith.addf %51, %52 : vector<32x128xf32>
    %cst_21 = arith.constant dense<0.000000e+00> : vector<128xf32>
    %54 = vector.multi_reduction <add>, %53, %cst_21 [0] : vector<32x128xf32> to vector<128xf32>
    %55 = vector.shape_cast %54 : vector<128xf32> to vector<1x128xf32>
    %cst_22 = arith.constant 3.200000e+01 : f32
    %56 = vector.broadcast %cst_22 : f32 to vector<1x128xf32>
    %57 = arith.divf %55, %56 : vector<1x128xf32>
    %58 = vector.broadcast %57 : vector<1x128xf32> to vector<32x128xf32>
    %59 = arith.subf %53, %58 : vector<32x128xf32>
    %60 = arith.mulf %59, %59 : vector<32x128xf32>
    %cst_23 = arith.constant dense<0.000000e+00> : vector<128xf32>
    %61 = vector.multi_reduction <add>, %60, %cst_23 [0] : vector<32x128xf32> to vector<128xf32>
    %62 = vector.shape_cast %61 : vector<128xf32> to vector<1x128xf32>
    %cst_24 = arith.constant 3.200000e+01 : f32
    %63 = vector.broadcast %cst_24 : f32 to vector<1x128xf32>
    %64 = arith.divf %62, %63 : vector<1x128xf32>
    %65 = vector.broadcast %57 : vector<1x128xf32> to vector<32x128xf32>
    %66 = arith.subf %53, %65 : vector<32x128xf32>
    %cst_25 = arith.constant 9.99999974E-6 : f32
    %67 = vector.broadcast %cst_25 : f32 to vector<1x128xf32>
    %68 = arith.addf %64, %67 : vector<1x128xf32>
    %69 = math.rsqrt %68 : vector<1x128xf32>
    %70 = vector.broadcast %69 : vector<1x128xf32> to vector<32x128xf32>
    %71 = arith.mulf %66, %70 : vector<32x128xf32>
    %72 = vector.broadcast %6 : vector<32x1xf32> to vector<32x128xf32>
    %73 = arith.mulf %71, %72 : vector<32x128xf32>
    %74 = vector.broadcast %7 : vector<32x1xf32> to vector<32x128xf32>
    %75 = arith.addf %73, %74 : vector<32x128xf32>
    %c0_26 = arith.constant 0 : index
    %c0_27 = arith.constant 0 : index
    %76 = vector.load %arg3[%c0_26, %c0_27] : memref<32x128xf32, #tpu.memory_space<vmem>>, vector<32x128xf32>
    tpu.vector_store %arg3[%c0_26, %c0_27], %75 {strides = array<i32>} : memref<32x128xf32, #tpu.memory_space<vmem>>, vector<32x128xf32>,
    return
  }
  func.func @transform_0(%arg0: i32) -> (i32, i32) {
    %c0_i32 = arith.constant 0 : i32
    %c0_i32_0 = arith.constant 0 : i32
    return %c0_i32, %arg0 : i32, i32
  }
  func.func @transform_1(%arg0: i32) -> (i32, i32) {
    %c0_i32 = arith.constant 0 : i32
    %c0_i32_0 = arith.constant 0 : i32
    %c0_i32_1 = arith.constant 0 : i32
    return %c0_i32, %c0_i32_0 : i32, i32
  }
  func.func @transform_2(%arg0: i32) -> (i32, i32) {
    %c0_i32 = arith.constant 0 : i32
    %c0_i32_0 = arith.constant 0 : i32
    return %c0_i32, %arg0 : i32, i32
  }
}

</mosaic_0001>

<llo_original>
// kernel: tpu_custom_call.1
$region0: #{tpu_custom_call.1}
  #allocation0 [shape = 'u32[]', space=smem, size = 0x4, offset = 0x4, fixed_abs, tag = 'smem constant byte address 0x4 - core index']
  #allocation1 [shape = 'u32[72,128]{1,0:T(1,128)}', space=vmem, size = 0x9000, scoped, tag = 'internal scratch']
  %s0 = inlined_call_operand.hbm [shape: f32[8,128], index: 0, kind: input, shape index: {}]
  %s1 = inlined_call_operand.hbm [shape: f32[96,128], index: 1, kind: input, shape index: {}]
  %s2 = inlined_call_operand.hbm [shape: f32[32,128], index: 2, kind: output, shape index: {}]
  %s3 = sld [smem:[#allocation0]]
  $region26: #{tpu_custom_call.1} parent=0
    _
  %s5 = ssub.s32 1, %s3
  %s6 = scalar_select 0, %s5, %s3
  $region1: #{tpu_custom_call.1} parent=0
    #allocation2 [shape = 'u8[4096]{0}', space=vmem, size = 0x1000, scoped, tag = 'input window, operand 0, single buffered']
    #allocation3 [shape = 's32[1]{0}', space=sflag, size = 0x4, scoped, tag = 'scoped memory for tpu_custom_call.1']
    #allocation4 [shape = 's32[1]{0}', space=sflag, size = 0x4, scoped, tag = 'scoped memory for tpu_custom_call.1']
    #allocation5 [shape = 'u8[49152]{0}', space=vmem, size = 0xc000, scoped, tag = 'input window, operand 1, single buffered']
    #allocation6 [shape = 's32[1]{0}', space=sflag, size = 0x4, scoped, tag = 'scoped memory for tpu_custom_call.1']
    #allocation7 [shape = 'u8[16384]{0}', space=vmem, size = 0x4000, scoped, tag = 'output window, operand 0, single buffered']
    %7 = vsyncpa [#allocation3], 0
    %8 = vsyncpa [#allocation6], 0
    %9 = vsyncpa [#allocation4], 0
    // Predicated region
    $region2: #{tpu_custom_call.1} parent=1 // pred_check
      _
    $region3: #{tpu_custom_call.1} parent=1 // pred_check_branch
      %11 = sbr.rel (0) target = $region5
    $region4: #{tpu_custom_call.1} parent=1 // pred_region
      %13 = vsyncadd [#allocation3], 0
      %s15 = sshll.u32 %s0, 4
      %s16 = int_to_ptr.hbm [resolvable:$true] %s15
      %s17 = sshll.u32 [#allocation2], 4
      %s18 = int_to_ptr.vmem [resolvable:$true] %s17
      %20 = dma.hbm_to_vmem [thread:$0]  %s16, 128, %s18, [#allocation3]
    $region5: #{tpu_custom_call.1} parent=1 // pred_fallthru
      _
    // Predicated region
    $region6: #{tpu_custom_call.1} parent=1 // pred_check
      _
    $region7: #{tpu_custom_call.1} parent=1 // pred_check_branch
      %22 = sbr.rel (0) target = $region9
    $region8: #{tpu_custom_call.1} parent=1 // pred_region
      %24 = vsyncadd [#allocation6], 0
      %s25 = sshll.u32 %s1, 4
      %s26 = int_to_ptr.hbm [resolvable:$true] %s25
      %s27 = sshll.u32 [#allocation5], 4
      %s28 = int_to_ptr.vmem [resolvable:$true] %s27
      %33 = dma.hbm_to_vmem [thread:$0]  %s26, 1536, %s28, [#allocation6], 128, 128, 8
    $region9: #{tpu_custom_call.1} parent=1 // pred_fallthru
      _
    // Predicated region
    $region10: #{tpu_custom_call.1} parent=1 // pred_check
      _
    $region11: #{tpu_custom_call.1} parent=1 // pred_check_branch
      %35 = sbr.rel (0) target = $region13
    $region12: #{tpu_custom_call.1} parent=1 // pred_region
      %37 = dma.done [#allocation3], 128
    $region13: #{tpu_custom_call.1} parent=1 // pred_fallthru
      _
    // Predicated region
    $region14: #{tpu_custom_call.1} parent=1 // pred_check
      _
    $region15: #{tpu_custom_call.1} parent=1 // pred_check_branch
      %39 = sbr.rel (0) target = $region17
    $region16: #{tpu_custom_call.1} parent=1 // pred_region
      %41 = dma.done [#allocation6], 1536
    $region17: #{tpu_custom_call.1} parent=1 // pred_fallthru
      _
    %v42 = vld [vmem:[#allocation5] sm:$0xff]
    %v43 = vld [vmem:[#allocation5 + $0x8] sm:$0xff]
    %v44 = vld [vmem:[#allocation5 + $0x10] sm:$0xff]
    %v45 = vld [vmem:[#allocation5 + $0x18] sm:$0xff]
    %v46 = vld [vmem:[#allocation5 + $0x20] sm:$0xff]
    %v47 = vld [vmem:[#allocation5 + $0x28] sm:$0xff]
    %v48 = vld [vmem:[#allocation5 + $0x30] sm:$0xff]
    %v49 = vld [vmem:[#allocation5 + $0x38] sm:$0xff]
    %v50 = vld [vmem:[#allocation5 + $0x40] sm:$0xff]
    %v51 = vld [vmem:[#allocation5 + $0x48] sm:$0xff]
    %v52 = vld [vmem:[#allocation5 + $0x50] sm:$0xff]
    %v53 = vld [vmem:[#allocation5 + $0x58] sm:$0xff]
    %v54 = vld [vmem:[#allocation2] sm:$0x1]
    %56 = vset.pattern.permute.xlu0 67
    %57 = vperm.xlu0 %56, %v50
    %v58 = vpop.permute.xlu0 %57
    %61 = vset.pattern.permute.xlu0 67
    %62 = vperm.xlu0 %61, %v51
    %v63 = vpop.permute.xlu0 %62
    %66 = vset.pattern.permute.xlu0 67
    %67 = vperm.xlu0 %66, %v52
    %v68 = vpop.permute.xlu0 %67
    %71 = vset.pattern.permute.xlu0 67
    %72 = vperm.xlu0 %71, %v53
    %v73 = vpop.permute.xlu0 %72
    %v75 = vperm.slane %v54, 0
    %v76 = vmul.f32 %v58, %v75
    %v77 = vmul.f32 %v63, %v75
    %v78 = vmul.f32 %v68, %v75
    %v79 = vmul.f32 %v73, %v75
    %80 = vset.pattern.permute.xlu0 68
    %81 = vperm.xlu0 %80, %v50
    %v82 = vpop.permute.xlu0 %81
    %84 = vset.pattern.permute.xlu0 68
    %85 = vperm.xlu0 %84, %v51
    %v86 = vpop.permute.xlu0 %85
    %88 = vset.pattern.permute.xlu0 68
    %89 = vperm.xlu0 %88, %v52
    %v90 = vpop.permute.xlu0 %89
    %92 = vset.pattern.permute.xlu0 68
    %93 = vperm.xlu0 %92, %v53
    %v94 = vpop.permute.xlu0 %93
    %v96 = vadd.f32 %v76, %v82
    %v97 = vadd.f32 %v77, %v86
    %v98 = vadd.f32 %v78, %v90
    %v99 = vadd.f32 %v79, %v94
    %v100 = vand.u32 2147483647, %v96
    %vm101 = vcmp.le.f32.partialorder %v100, 0.7853982
    %vm102 = vcmp.lt.s32.totalorder %v96, 0
    %v103 = vand.u32 %v96, 2139095040
    %v104 = vshrl.u32 %v103, 23
    %v105 = vsub.s32 %v104, 127
    %v106 = vand.u32 2147483647, %v96
    %v107 = vand.u32 %v106, 8388607
    %v108 = vor.u32 %v107, 8388608
    %v109 = vsub.s32 0, %v108
    %v110 = vadd.s32 %v105, 1
    %vm111 = vcmp.gt.s32.totalorder %v110, 0
    %v112 = vsel %vm111, %v110, 0
    %v113 = vshrl.u32 %v112, 5
    %v114 = vand.u32 %v112, 31
    %v115 = vsub.s32 32, %v114
    %v116 = vshrl.u32 683565275, %v115
    %v117 = vshll.u32 683565275, %v114
    %v118 = vshrl.u32 2475754826, %v115
    %v119 = vor.u32 %v117, %v118
    %v120 = vshll.u32 2475754826, %v114
    %v121 = vshrl.u32 2131351028, %v115
    %v122 = vor.u32 %v120, %v121
    %v123 = vshll.u32 2131351028, %v114
    %v124 = vshrl.u32 2102212464, %v115
    %v125 = vor.u32 %v123, %v124
    %v126 = vshll.u32 2102212464, %v114
    %v127 = vshrl.u32 920167782, %v115
    %v128 = vor.u32 %v126, %v127
    %v129 = vshll.u32 920167782, %v114
    %v130 = vshrl.u32 1326507024, %v115
    %v131 = vor.u32 %v129, %v130
    %vm132 = vcmp.lt.s32.totalorder %v113, 1
    %vm133 = vcmp.lt.s32.totalorder %v113, 2
    %vm134 = vcmp.lt.s32.totalorder %v113, 3
    %vm135 = vcmp.lt.s32.totalorder %v113, 4
    %v136 = vsel %vm132, %v116, %v119
    %v137 = vsel %vm135, %v125, 2102212464
    %v138 = vsel %vm134, %v122, %v137
    %v139 = vsel %vm133, %v136, %v138
    %v140 = vsel %vm132, %v119, %v122
    %v141 = vsel %vm135, %v128, 920167782
    %v142 = vsel %vm134, %v125, %v141
    %v143 = vsel %vm133, %v140, %v142
    %v144 = vsel %vm132, %v122, %v125
    %v145 = vsel %vm135, %v131, 1326507024
    %v146 = vsel %vm134, %v128, %v145
    %v147 = vsel %vm133, %v144, %v146
    %v148 = vshll.u32 %v108, 8
    %v149 = vand.u32 %v148, 65535
    %v150 = vshrl.u32 %v148, 16
    %v151 = vand.u32 %v147, 65535
    %v152 = vshrl.u32 %v147, 16
    %v153 = vmul.u32 %v149, %v151
    %v154 = vmul.u32 %v149, %v152
    %v155 = vmul.u32 %v150, %v151
    %v156 = vmul.u32 %v150, %v152
    %v157 = vshll.u32 %v154, 16
    %v158 = vshrl.u32 %v154, 16
    %v159 = vshll.u32 %v155, 16
    %v160 = vshrl.u32 %v155, 16
    %vm161 = vc.u32 %v153, %v157
    %v162 = vsel %vm161, 1, 0
    %v163 = vadd.s32 %v153, %v157
    %v164 = vadd.s32 %v156, %v162
    %vm165 = vc.u32 %v163, %v159
    %v166 = vsel %vm165, 1, 0
    %v167 = vadd.s32 %v163, %v159
    %v168 = vadd.s32 %v164, %v166
    %v169 = vadd.s32 %v168, %v158
    %v170 = vadd.s32 %v169, %v160
    %v171 = vand.u32 %v148, 65535
    %v172 = vshrl.u32 %v148, 16
    %v173 = vand.u32 %v143, 65535
    %v174 = vshrl.u32 %v143, 16
    %v175 = vmul.u32 %v171, %v173
    %v176 = vmul.u32 %v171, %v174
    %v177 = vmul.u32 %v172, %v173
    %v178 = vmul.u32 %v172, %v174
    %v179 = vshll.u32 %v176, 16
    %v180 = vshrl.u32 %v176, 16
    %v181 = vshll.u32 %v177, 16
    %v182 = vshrl.u32 %v177, 16
    %vm183 = vc.u32 %v175, %v179
    %v184 = vsel %vm183, 1, 0
    %v185 = vadd.s32 %v175, %v179
    %v186 = vadd.s32 %v178, %v184
    %vm187 = vc.u32 %v185, %v181
    %v188 = vsel %vm187, 1, 0
    %v189 = vadd.s32 %v185, %v181
    %v190 = vadd.s32 %v186, %v188
    %v191 = vadd.s32 %v190, %v180
    %v192 = vadd.s32 %v191, %v182
    %v193 = vmul.u32 %v148, %v139
    %v194 = vadd.s32 %v170, %v189
    %vm195 = vc.u32 %v170, %v189
    %v196 = vadd.s32 %v192, 1
    %v197 = vsel %vm195, %v196, %v192
    %v198 = vadd.s32 %v193, %v197
    %v199 = vadd.s32 %v198, 536870912
    %v200 = vshrl.u32 %v199, 30
    %v201 = vshll.u32 %v200, 30
    %v202 = vsub.s32 %v198, %v201
    %vm203 = vcmp.lt.s32.totalorder %v202, 0
    %v204 = vsub.s32 0, %v202
    %v205 = vsel %vm203, %v204, %v202
    %v206 = vclz %v205
    %v207 = vsub.s32 %v206, 2
    %vm208 = vcmp.gt.s32.totalorder 0, %v207
    %v209 = vsel %vm208, 0, %v207
    %v210 = vsub.s32 32, %v209
    %v211 = vshll.u32 %v202, %v209
    %v212 = vshrl.u32 %v194, %v210
    %v213 = vor.u32 %v211, %v212
    %v214 = vsub.s32 4294967266, %v209
    %v215 = vadd.s32 %v214, 127
    %v216 = vshll.u32 %v215, 23
    %v217 = vor.u32 4788187, %v216
    %v218 = vand.u32 2147483647, %v217
    %v220 = vcvt.s32.f32 %v213
    %v221 = vmul.f32 %v220, %v218
    %v222 = vxor.u32 %v221, 2147483648
    %v223 = vsel %vm102, %v222, %v221
    %v224 = vsub.s32 4, %v200
    %v225 = vsel %vm102, %v224, %v200
    %v226 = vsel %vm101, %v96, %v223
    %v227 = vsel %vm101, 0, %v225
    %v228 = vmul.f32 %v226, %v226
    %v229 = vmul.f32 %v228, -0.001358992
    %v230 = vadd.f32 %v229, 0.041655596
    %v231 = vmul.f32 %v228, %v230
    %v232 = vadd.f32 %v231, -0.4999988
    %v233 = vmul.f32 %v228, %v232
    %v234 = vadd.f32 1.0, %v233
    %v235 = vmul.f32 %v226, %v226
    %v236 = vmul.f32 %v235, -0.00019511016
    %v237 = vadd.f32 %v236, 0.008332121
    %v238 = vmul.f32 %v235, %v237
    %v239 = vadd.f32 %v238, -0.16666654
    %v240 = vmul.f32 %v235, %v239
    %v241 = vadd.f32 %v240, 1.0
    %v242 = vmul.f32 %v241, %v226
    %vm243 = vweird.f32 %v96
    %v244 = vadd.s32 %v227, 3
    %v245 = vand.u32 %v244, 3
    %vm246 = vcmp.lt.s32.totalorder %v245, 2
    %vm247 = vcmp.eq.s32.totalorder %v245, 0
    %v248 = vxor.u32 %v242, 2147483648
    %v249 = vsel %vm247, %v234, %v248
    %vm250 = vcmp.eq.s32.totalorder %v245, 2
    %v251 = vxor.u32 %v234, 2147483648
    %v252 = vsel %vm250, %v251, %v242
    %v253 = vsel %vm246, %v249, %v252
    %v254 = vsel %vm243, nan, %v253
    %v255 = vand.u32 2147483647, %v97
    %vm256 = vcmp.le.f32.partialorder %v255, 0.7853982
    %vm257 = vcmp.lt.s32.totalorder %v97, 0
    %v258 = vand.u32 %v97, 2139095040
    %v259 = vshrl.u32 %v258, 23
    %v260 = vsub.s32 %v259, 127
    %v261 = vand.u32 2147483647, %v97
    %v262 = vand.u32 %v261, 8388607
    %v263 = vor.u32 %v262, 8388608
    %v264 = vsub.s32 0, %v263
    %v265 = vadd.s32 %v260, 1
    %vm266 = vcmp.gt.s32.totalorder %v265, 0
    %v267 = vsel %vm266, %v265, 0
    %v268 = vshrl.u32 %v267, 5
    %v269 = vand.u32 %v267, 31
    %v270 = vsub.s32 32, %v269
    %v271 = vshrl.u32 683565275, %v270
    %v272 = vshll.u32 683565275, %v269
    %v273 = vshrl.u32 2475754826, %v270
    %v274 = vor.u32 %v272, %v273
    %v275 = vshll.u32 2475754826, %v269
    %v276 = vshrl.u32 2131351028, %v270
    %v277 = vor.u32 %v275, %v276
    %v278 = vshll.u32 2131351028, %v269
    %v279 = vshrl.u32 2102212464, %v270
    %v280 = vor.u32 %v278, %v279
    %v281 = vshll.u32 2102212464, %v269
    %v282 = vshrl.u32 920167782, %v270
    %v283 = vor.u32 %v281, %v282
    %v284 = vshll.u32 920167782, %v269
    %v285 = vshrl.u32 1326507024, %v270
    %v286 = vor.u32 %v284, %v285
    %vm287 = vcmp.lt.s32.totalorder %v268, 1
    %vm288 = vcmp.lt.s32.totalorder %v268, 2
    %vm289 = vcmp.lt.s32.totalorder %v268, 3
    %vm290 = vcmp.lt.s32.totalorder %v268, 4
    %v291 = vsel %vm287, %v271, %v274
    %v292 = vsel %vm290, %v280, 2102212464
    %v293 = vsel %vm289, %v277, %v292
    %v294 = vsel %vm288, %v291, %v293
    %v295 = vsel %vm287, %v274, %v277
    %v296 = vsel %vm290, %v283, 920167782
    %v297 = vsel %vm289, %v280, %v296
    %v298 = vsel %vm288, %v295, %v297
    %v299 = vsel %vm287, %v277, %v280
    %v300 = vsel %vm290, %v286, 1326507024
    %v301 = vsel %vm289, %v283, %v300
    %v302 = vsel %vm288, %v299, %v301
    %v303 = vshll.u32 %v263, 8
    %v304 = vand.u32 %v303, 65535
    %v305 = vshrl.u32 %v303, 16
    %v306 = vand.u32 %v302, 65535
    %v307 = vshrl.u32 %v302, 16
    %v308 = vmul.u32 %v304, %v306
    %v309 = vmul.u32 %v304, %v307
    %v310 = vmul.u32 %v305, %v306
    %v311 = vmul.u32 %v305, %v307
    %v312 = vshll.u32 %v309, 16
    %v313 = vshrl.u32 %v309, 16
    %v314 = vshll.u32 %v310, 16
    %v315 = vshrl.u32 %v310, 16
    %vm316 = vc.u32 %v308, %v312
    %v317 = vsel %vm316, 1, 0
    %v318 = vadd.s32 %v308, %v312
    %v319 = vadd.s32 %v311, %v317
    %vm320 = vc.u32 %v318, %v314
    %v321 = vsel %vm320, 1, 0
    %v322 = vadd.s32 %v318, %v314
    %v323 = vadd.s32 %v319, %v321
    %v324 = vadd.s32 %v323, %v313
    %v325 = vadd.s32 %v324, %v315
    %v326 = vand.u32 %v303, 65535
    %v327 = vshrl.u32 %v303, 16
    %v328 = vand.u32 %v298, 65535
    %v329 = vshrl.u32 %v298, 16
    %v330 = vmul.u32 %v326, %v328
    %v331 = vmul.u32 %v326, %v329
    %v332 = vmul.u32 %v327, %v328
    %v333 = vmul.u32 %v327, %v329
    %v334 = vshll.u32 %v331, 16
    %v335 = vshrl.u32 %v331, 16
    %v336 = vshll.u32 %v332, 16
    %v337 = vshrl.u32 %v332, 16
    %vm338 = vc.u32 %v330, %v334
    %v339 = vsel %vm338, 1, 0
    %v340 = vadd.s32 %v330, %v334
    %v341 = vadd.s32 %v333, %v339
    %vm342 = vc.u32 %v340, %v336
    %v343 = vsel %vm342, 1, 0
    %v344 = vadd.s32 %v340, %v336
    %v345 = vadd.s32 %v341, %v343
    %v346 = vadd.s32 %v345, %v335
    %v347 = vadd.s32 %v346, %v337
    %v348 = vmul.u32 %v303, %v294
    %v349 = vadd.s32 %v325, %v344
    %vm350 = vc.u32 %v325, %v344
    %v351 = vadd.s32 %v347, 1
    %v352 = vsel %vm350, %v351, %v347
    %v353 = vadd.s32 %v348, %v352
    %v354 = vadd.s32 %v353, 536870912
    %v355 = vshrl.u32 %v354, 30
    %v356 = vshll.u32 %v355, 30
    %v357 = vsub.s32 %v353, %v356
    %vm358 = vcmp.lt.s32.totalorder %v357, 0
    %v359 = vsub.s32 0, %v357
    %v360 = vsel %vm358, %v359, %v357
    %v361 = vclz %v360
    %v362 = vsub.s32 %v361, 2
    %vm363 = vcmp.gt.s32.totalorder 0, %v362
    %v364 = vsel %vm363, 0, %v362
    %v365 = vsub.s32 32, %v364
    %v366 = vshll.u32 %v357, %v364
    %v367 = vshrl.u32 %v349, %v365
    %v368 = vor.u32 %v366, %v367
    %v369 = vsub.s32 4294967266, %v364
    %v370 = vadd.s32 %v369, 127
    %v371 = vshll.u32 %v370, 23
    %v372 = vor.u32 4788187, %v371
    %v373 = vand.u32 2147483647, %v372
    %v375 = vcvt.s32.f32 %v368
    %v376 = vmul.f32 %v375, %v373
    %v377 = vxor.u32 %v376, 2147483648
    %v378 = vsel %vm257, %v377, %v376
    %v379 = vsub.s32 4, %v355
    %v380 = vsel %vm257, %v379, %v355
    %v381 = vsel %vm256, %v97, %v378
    %v382 = vsel %vm256, 0, %v380
    %v383 = vmul.f32 %v381, %v381
    %v384 = vmul.f32 %v383, -0.001358992
    %v385 = vadd.f32 %v384, 0.041655596
    %v386 = vmul.f32 %v383, %v385
    %v387 = vadd.f32 %v386, -0.4999988
    %v388 = vmul.f32 %v383, %v387
    %v389 = vadd.f32 1.0, %v388
    %v390 = vmul.f32 %v381, %v381
    %v391 = vmul.f32 %v390, -0.00019511016
    %v392 = vadd.f32 %v391, 0.008332121
    %v393 = vmul.f32 %v390, %v392
    %v394 = vadd.f32 %v393, -0.16666654
    %v395 = vmul.f32 %v390, %v394
    %v396 = vadd.f32 %v395, 1.0
    %v397 = vmul.f32 %v396, %v381
    %vm398 = vweird.f32 %v97
    %v399 = vadd.s32 %v382, 3
    %v400 = vand.u32 %v399, 3
    %vm401 = vcmp.lt.s32.totalorder %v400, 2
    %vm402 = vcmp.eq.s32.totalorder %v400, 0
    %v403 = vxor.u32 %v397, 2147483648
    %v404 = vsel %vm402, %v389, %v403
    %vm405 = vcmp.eq.s32.totalorder %v400, 2
    %v406 = vxor.u32 %v389, 2147483648
    %v407 = vsel %vm405, %v406, %v397
    %v408 = vsel %vm401, %v404, %v407
    %v409 = vsel %vm398, nan, %v408
    %v410 = vand.u32 2147483647, %v98
    %vm411 = vcmp.le.f32.partialorder %v410, 0.7853982
    %vm412 = vcmp.lt.s32.totalorder %v98, 0
    %v413 = vand.u32 %v98, 2139095040
    %v414 = vshrl.u32 %v413, 23
    %v415 = vsub.s32 %v414, 127
    %v416 = vand.u32 2147483647, %v98
    %v417 = vand.u32 %v416, 8388607
    %v418 = vor.u32 %v417, 8388608
    %v419 = vsub.s32 0, %v418
    %v420 = vadd.s32 %v415, 1
    %vm421 = vcmp.gt.s32.totalorder %v420, 0
    %v422 = vsel %vm421, %v420, 0
    %v423 = vshrl.u32 %v422, 5
    %v424 = vand.u32 %v422, 31
    %v425 = vsub.s32 32, %v424
    %v426 = vshrl.u32 683565275, %v425
    %v427 = vshll.u32 683565275, %v424
    %v428 = vshrl.u32 2475754826, %v425
    %v429 = vor.u32 %v427, %v428
    %v430 = vshll.u32 2475754826, %v424
    %v431 = vshrl.u32 2131351028, %v425
    %v432 = vor.u32 %v430, %v431
    %v433 = vshll.u32 2131351028, %v424
    %v434 = vshrl.u32 2102212464, %v425
    %v435 = vor.u32 %v433, %v434
    %v436 = vshll.u32 2102212464, %v424
    %v437 = vshrl.u32 920167782, %v425
    %v438 = vor.u32 %v436, %v437
    %v439 = vshll.u32 920167782, %v424
    %v440 = vshrl.u32 1326507024, %v425
    %v441 = vor.u32 %v439, %v440
    %vm442 = vcmp.lt.s32.totalorder %v423, 1
    %vm443 = vcmp.lt.s32.totalorder %v423, 2
    %vm444 = vcmp.lt.s32.totalorder %v423, 3
    %vm445 = vcmp.lt.s32.totalorder %v423, 4
    %v446 = vsel %vm442, %v426, %v429
    %v447 = vsel %vm445, %v435, 2102212464
    %v448 = vsel %vm444, %v432, %v447
    %v449 = vsel %vm443, %v446, %v448
    %v450 = vsel %vm442, %v429, %v432
    %v451 = vsel %vm445, %v438, 920167782
    %v452 = vsel %vm444, %v435, %v451
    %v453 = vsel %vm443, %v450, %v452
    %v454 = vsel %vm442, %v432, %v435
    %v455 = vsel %vm445, %v441, 1326507024
    %v456 = vsel %vm444, %v438, %v455
    %v457 = vsel %vm443, %v454, %v456
    %v458 = vshll.u32 %v418, 8
    %v459 = vand.u32 %v458, 65535
    %v460 = vshrl.u32 %v458, 16
    %v461 = vand.u32 %v457, 65535
    %v462 = vshrl.u32 %v457, 16
    %v463 = vmul.u32 %v459, %v461
    %v464 = vmul.u32 %v459, %v462
    %v465 = vmul.u32 %v460, %v461
    %v466 = vmul.u32 %v460, %v462
    %v467 = vshll.u32 %v464, 16
    %v468 = vshrl.u32 %v464, 16
    %v469 = vshll.u32 %v465, 16
    %v470 = vshrl.u32 %v465, 16
    %vm471 = vc.u32 %v463, %v467
    %v472 = vsel %vm471, 1, 0
    %v473 = vadd.s32 %v463, %v467
    %v474 = vadd.s32 %v466, %v472
    %vm475 = vc.u32 %v473, %v469
    %v476 = vsel %vm475, 1, 0
    %v477 = vadd.s32 %v473, %v469
    %v478 = vadd.s32 %v474, %v476
    %v479 = vadd.s32 %v478, %v468
    %v480 = vadd.s32 %v479, %v470
    %v481 = vand.u32 %v458, 65535
    %v482 = vshrl.u32 %v458, 16
    %v483 = vand.u32 %v453, 65535
    %v484 = vshrl.u32 %v453, 16
    %v485 = vmul.u32 %v481, %v483
    %v486 = vmul.u32 %v481, %v484
    %v487 = vmul.u32 %v482, %v483
    %v488 = vmul.u32 %v482, %v484
    %v489 = vshll.u32 %v486, 16
    %v490 = vshrl.u32 %v486, 16
    %v491 = vshll.u32 %v487, 16
    %v492 = vshrl.u32 %v487, 16
    %vm493 = vc.u32 %v485, %v489
    %v494 = vsel %vm493, 1, 0
    %v495 = vadd.s32 %v485, %v489
    %v496 = vadd.s32 %v488, %v494
    %vm497 = vc.u32 %v495, %v491
    %v498 = vsel %vm497, 1, 0
    %v499 = vadd.s32 %v495, %v491
    %v500 = vadd.s32 %v496, %v498
    %v501 = vadd.s32 %v500, %v490
    %v502 = vadd.s32 %v501, %v492
    %v503 = vmul.u32 %v458, %v449
    %v504 = vadd.s32 %v480, %v499
    %vm505 = vc.u32 %v480, %v499
    %v506 = vadd.s32 %v502, 1
    %v507 = vsel %vm505, %v506, %v502
    %v508 = vadd.s32 %v503, %v507
    %v509 = vadd.s32 %v508, 536870912
    %v510 = vshrl.u32 %v509, 30
    %v511 = vshll.u32 %v510, 30
    %v512 = vsub.s32 %v508, %v511
    %vm513 = vcmp.lt.s32.totalorder %v512, 0
    %v514 = vsub.s32 0, %v512
    %v515 = vsel %vm513, %v514, %v512
    %v516 = vclz %v515
    %v517 = vsub.s32 %v516, 2
    %vm518 = vcmp.gt.s32.totalorder 0, %v517
    %v519 = vsel %vm518, 0, %v517
    %v520 = vsub.s32 32, %v519
    %v521 = vshll.u32 %v512, %v519
    %v522 = vshrl.u32 %v504, %v520
    %v523 = vor.u32 %v521, %v522
    %v524 = vsub.s32 4294967266, %v519
    %v525 = vadd.s32 %v524, 127
    %v526 = vshll.u32 %v525, 23
    %v527 = vor.u32 4788187, %v526
    %v528 = vand.u32 2147483647, %v527
    %v530 = vcvt.s32.f32 %v523
    %v531 = vmul.f32 %v530, %v528
    %v532 = vxor.u32 %v531, 2147483648
    %v533 = vsel %vm412, %v532, %v531
    %v534 = vsub.s32 4, %v510
    %v535 = vsel %vm412, %v534, %v510
    %v536 = vsel %vm411, %v98, %v533
    %v537 = vsel %vm411, 0, %v535
    %v538 = vmul.f32 %v536, %v536
    %v539 = vmul.f32 %v538, -0.001358992
    %v540 = vadd.f32 %v539, 0.041655596
    %v541 = vmul.f32 %v538, %v540
    %v542 = vadd.f32 %v541, -0.4999988
    %v543 = vmul.f32 %v538, %v542
    %v544 = vadd.f32 1.0, %v543
    %v545 = vmul.f32 %v536, %v536
    %v546 = vmul.f32 %v545, -0.00019511016
    %v547 = vadd.f32 %v546, 0.008332121
    %v548 = vmul.f32 %v545, %v547
    %v549 = vadd.f32 %v548, -0.16666654
    %v550 = vmul.f32 %v545, %v549
    %v551 = vadd.f32 %v550, 1.0
    %v552 = vmul.f32 %v551, %v536
    %vm553 = vweird.f32 %v98
    %v554 = vadd.s32 %v537, 3
    %v555 = vand.u32 %v554, 3
    %vm556 = vcmp.lt.s32.totalorder %v555, 2
    %vm557 = vcmp.eq.s32.totalorder %v555, 0
    %v558 = vxor.u32 %v552, 2147483648
    %v559 = vsel %vm557, %v544, %v558
    %vm560 = vcmp.eq.s32.totalorder %v555, 2
    %v561 = vxor.u32 %v544, 2147483648
    %v562 = vsel %vm560, %v561, %v552
    %v563 = vsel %vm556, %v559, %v562
    %v564 = vsel %vm553, nan, %v563
    %v565 = vand.u32 2147483647, %v99
    %vm566 = vcmp.le.f32.partialorder %v565, 0.7853982
    %vm567 = vcmp.lt.s32.totalorder %v99, 0
    %v568 = vand.u32 %v99, 2139095040
    %v569 = vshrl.u32 %v568, 23
    %v570 = vsub.s32 %v569, 127
    %v571 = vand.u32 2147483647, %v99
    %v572 = vand.u32 %v571, 8388607
    %v573 = vor.u32 %v572, 8388608
    %v574 = vsub.s32 0, %v573
    %v575 = vadd.s32 %v570, 1
    %vm576 = vcmp.gt.s32.totalorder %v575, 0
    %v577 = vsel %vm576, %v575, 0
    %v578 = vshrl.u32 %v577, 5
    %v579 = vand.u32 %v577, 31
    %v580 = vsub.s32 32, %v579
    %v581 = vshrl.u32 683565275, %v580
    %v582 = vshll.u32 683565275, %v579
    %v583 = vshrl.u32 2475754826, %v580
    %v584 = vor.u32 %v582, %v583
    %v585 = vshll.u32 2475754826, %v579
    %v586 = vshrl.u32 2131351028, %v580
    %v587 = vor.u32 %v585, %v586
    %v588 = vshll.u32 2131351028, %v579
    %v589 = vshrl.u32 2102212464, %v580
    %v590 = vor.u32 %v588, %v589
    %v591 = vshll.u32 2102212464, %v579
    %v592 = vshrl.u32 920167782, %v580
    %v593 = vor.u32 %v591, %v592
    %v594 = vshll.u32 920167782, %v579
    %v595 = vshrl.u32 1326507024, %v580
    %v596 = vor.u32 %v594, %v595
    %vm597 = vcmp.lt.s32.totalorder %v578, 1
    %vm598 = vcmp.lt.s32.totalorder %v578, 2
    %vm599 = vcmp.lt.s32.totalorder %v578, 3
    %vm600 = vcmp.lt.s32.totalorder %v578, 4
    %v601 = vsel %vm597, %v581, %v584
    %v602 = vsel %vm600, %v590, 2102212464
    %v603 = vsel %vm599, %v587, %v602
    %v604 = vsel %vm598, %v601, %v603
    %v605 = vsel %vm597, %v584, %v587
    %v606 = vsel %vm600, %v593, 920167782
    %v607 = vsel %vm599, %v590, %v606
    %v608 = vsel %vm598, %v605, %v607
    %v609 = vsel %vm597, %v587, %v590
    %v610 = vsel %vm600, %v596, 1326507024
    %v611 = vsel %vm599, %v593, %v610
    %v612 = vsel %vm598, %v609, %v611
    %v613 = vshll.u32 %v573, 8
    %v614 = vand.u32 %v613, 65535
    %v615 = vshrl.u32 %v613, 16
    %v616 = vand.u32 %v612, 65535
    %v617 = vshrl.u32 %v612, 16
    %v618 = vmul.u32 %v614, %v616
    %v619 = vmul.u32 %v614, %v617
    %v620 = vmul.u32 %v615, %v616
    %v621 = vmul.u32 %v615, %v617
    %v622 = vshll.u32 %v619, 16
    %v623 = vshrl.u32 %v619, 16
    %v624 = vshll.u32 %v620, 16
    %v625 = vshrl.u32 %v620, 16
    %vm626 = vc.u32 %v618, %v622
    %v627 = vsel %vm626, 1, 0
    %v628 = vadd.s32 %v618, %v622
    %v629 = vadd.s32 %v621, %v627
    %vm630 = vc.u32 %v628, %v624
    %v631 = vsel %vm630, 1, 0
    %v632 = vadd.s32 %v628, %v624
    %v633 = vadd.s32 %v629, %v631
    %v634 = vadd.s32 %v633, %v623
    %v635 = vadd.s32 %v634, %v625
    %v636 = vand.u32 %v613, 65535
    %v637 = vshrl.u32 %v613, 16
    %v638 = vand.u32 %v608, 65535
    %v639 = vshrl.u32 %v608, 16
    %v640 = vmul.u32 %v636, %v638
    %v641 = vmul.u32 %v636, %v639
    %v642 = vmul.u32 %v637, %v638
    %v643 = vmul.u32 %v637, %v639
    %v644 = vshll.u32 %v641, 16
    %v645 = vshrl.u32 %v641, 16
    %v646 = vshll.u32 %v642, 16
    %v647 = vshrl.u32 %v642, 16
    %vm648 = vc.u32 %v640, %v644
    %v649 = vsel %vm648, 1, 0
    %v650 = vadd.s32 %v640, %v644
    %v651 = vadd.s32 %v643, %v649
    %vm652 = vc.u32 %v650, %v646
    %v653 = vsel %vm652, 1, 0
    %v654 = vadd.s32 %v650, %v646
    %v655 = vadd.s32 %v651, %v653
    %v656 = vadd.s32 %v655, %v645
    %v657 = vadd.s32 %v656, %v647
    %v658 = vmul.u32 %v613, %v604
    %v659 = vadd.s32 %v635, %v654
    %vm660 = vc.u32 %v635, %v654
    %v661 = vadd.s32 %v657, 1
    %v662 = vsel %vm660, %v661, %v657
    %v663 = vadd.s32 %v658, %v662
    %v664 = vadd.s32 %v663, 536870912
    %v665 = vshrl.u32 %v664, 30
    %v666 = vshll.u32 %v665, 30
    %v667 = vsub.s32 %v663, %v666
    %vm668 = vcmp.lt.s32.totalorder %v667, 0
    %v669 = vsub.s32 0, %v667
    %v670 = vsel %vm668, %v669, %v667
    %v671 = vclz %v670
    %v672 = vsub.s32 %v671, 2
    %vm673 = vcmp.gt.s32.totalorder 0, %v672
    %v674 = vsel %vm673, 0, %v672
    %v675 = vsub.s32 32, %v674
    %v676 = vshll.u32 %v667, %v674
    %v677 = vshrl.u32 %v659, %v675
    %v678 = vor.u32 %v676, %v677
    %v679 = vsub.s32 4294967266, %v674
    %v680 = vadd.s32 %v679, 127
    %v681 = vshll.u32 %v680, 23
    %v682 = vor.u32 4788187, %v681
    %v683 = vand.u32 2147483647, %v682
    %v685 = vcvt.s32.f32 %v678
    %v686 = vmul.f32 %v685, %v683
    %v687 = vxor.u32 %v686, 2147483648
    %v688 = vsel %vm567, %v687, %v686
    %v689 = vsub.s32 4, %v665
    %v690 = vsel %vm567, %v689, %v665
    %v691 = vsel %vm566, %v99, %v688
    %v692 = vsel %vm566, 0, %v690
    %v693 = vmul.f32 %v691, %v691
    %v694 = vmul.f32 %v693, -0.001358992
    %v695 = vadd.f32 %v694, 0.041655596
    %v696 = vmul.f32 %v693, %v695
    %v697 = vadd.f32 %v696, -0.4999988
    %v698 = vmul.f32 %v693, %v697
    %v699 = vadd.f32 1.0, %v698
    %v700 = vmul.f32 %v691, %v691
    %v701 = vmul.f32 %v700, -0.00019511016
    %v702 = vadd.f32 %v701, 0.008332121
    %v703 = vmul.f32 %v700, %v702
    %v704 = vadd.f32 %v703, -0.16666654
    %v705 = vmul.f32 %v700, %v704
    %v706 = vadd.f32 %v705, 1.0
    %v707 = vmul.f32 %v706, %v691
    %vm708 = vweird.f32 %v99
    %v709 = vadd.s32 %v692, 3
    %v710 = vand.u32 %v709, 3
    %vm711 = vcmp.lt.s32.totalorder %v710, 2
    %vm712 = vcmp.eq.s32.totalorder %v710, 0
    %v713 = vxor.u32 %v707, 2147483648
    %v714 = vsel %vm712, %v699, %v713
    %vm715 = vcmp.eq.s32.totalorder %v710, 2
    %v716 = vxor.u32 %v699, 2147483648
    %v717 = vsel %vm715, %v716, %v707
    %v718 = vsel %vm711, %v714, %v717
    %v719 = vsel %vm708, nan, %v718
    %v720 = vld [vmem:[#allocation2 + $0x1] sm:$0x1]
    %v721 = vperm.slane %v720, 0
    %v722 = vmul.f32 %v254, %v721
    %v723 = vmul.f32 %v409, %v721
    %v724 = vmul.f32 %v564, %v721
    %v725 = vmul.f32 %v719, %v721
    %727 = vset.pattern.permute.xlu0 32
    %728 = vperm.xlu0 %727, %v42
    %v729 = vpop.permute.xlu0 %728
    %732 = vset.pattern.permute.xlu0 32
    %733 = vperm.xlu0 %732, %v43
    %v734 = vpop.permute.xlu0 %733
    %737 = vset.pattern.permute.xlu0 32
    %738 = vperm.xlu0 %737, %v44
    %v739 = vpop.permute.xlu0 %738
    %742 = vset.pattern.permute.xlu0 32
    %743 = vperm.xlu0 %742, %v45
    %v744 = vpop.permute.xlu0 %743
    %747 = vset.pattern.permute.xlu0 32
    %748 = vperm.xlu0 %747, %v46
    %v749 = vpop.permute.xlu0 %748
    %752 = vset.pattern.permute.xlu0 32
    %753 = vperm.xlu0 %752, %v47
    %v754 = vpop.permute.xlu0 %753
    %757 = vset.pattern.permute.xlu0 32
    %758 = vperm.xlu0 %757, %v48
    %v759 = vpop.permute.xlu0 %758
    %762 = vset.pattern.permute.xlu0 32
    %763 = vperm.xlu0 %762, %v49
    %v764 = vpop.permute.xlu0 %763
    %vm766 = vcmask 261120
    %v767 = vsel %vm766, %v42, 0
    %v769 = vsel %vm766, %v43, 0
    %v771 = vsel %vm766, %v44, 0
    %v773 = vsel %vm766, %v45, 0
    %v775 = vsel %vm766, %v46, 0
    %v777 = vsel %vm766, %v47, 0
    %v779 = vsel %vm766, %v48, 0
    %v781 = vsel %vm766, %v49, 0
    %783 = vmatpush.msra.mxu0 0.0
    %784 = vmatpush.msra.mxu0 0.0
    %785 = vmatpush.msra.mxu0 0.0
    %786 = vmatpush.msra.mxu0 0.0
    %787 = vmatpush.msra.mxu0 0.0
    %788 = vmatpush.msra.mxu0 0.0
    %789 = vmatpush.msra.mxu0 0.0
    %790 = vmatpush.msra.mxu0 0.0
    %791 = vmatpush.msra.mxu0 0.0
    %792 = vmatpush.msra.mxu0 0.0
    %793 = vmatpush.msra.mxu0 0.0
    %794 = vmatpush.msra.mxu0 0.0
    %795 = vmatpush.msra.mxu0 %v725
    %796 = vmatpush.msra.mxu0 %v724
    %797 = vmatpush.msra.mxu0 %v723
    %798 = vmatpush.msra.mxu0 %v722
    %799 = vmatmul.f32.gmra.mxu0 %v767
    %v800 = vpop.f32.mrf.mxu0
    %v801 = vadd.f32 %v729, %v800
    %802 = vmatmul.f32.gmra.mxu0 %v769
    %v803 = vpop.f32.mrf.mxu0
    %v804 = vadd.f32 %v734, %v803
    %805 = vmatmul.f32.gmra.mxu0 %v771
    %v806 = vpop.f32.mrf.mxu0
    %v807 = vadd.f32 %v739, %v806
    %808 = vmatmul.f32.gmra.mxu0 %v773
    %v809 = vpop.f32.mrf.mxu0
    %v810 = vadd.f32 %v744, %v809
    %811 = vmatmul.f32.gmra.mxu0 %v775
    %v812 = vpop.f32.mrf.mxu0
    %v813 = vadd.f32 %v749, %v812
    %814 = vmatmul.f32.gmra.mxu0 %v777
    %v815 = vpop.f32.mrf.mxu0
    %v816 = vadd.f32 %v754, %v815
    %817 = vmatmul.f32.gmra.mxu0 %v779
    %v818 = vpop.f32.mrf.mxu0
    %v819 = vadd.f32 %v759, %v818
    %820 = vmatmul.f32.gmra.mxu0 %v781
    %v821 = vpop.f32.mrf.mxu0
    %v822 = vadd.f32 %v764, %v821
    %823 = vdwg.mxu0
    %v824 = vadd.f32 %v801, %v804
    %v825 = vadd.f32 %v824, %v807
    %v826 = vadd.f32 %v825, %v810
    %v827 = vadd.f32 %v826, %v813
    %v828 = vadd.f32 %v827, %v816
    %v829 = vadd.f32 %v828, %v819
    %v830 = vadd.f32 %v829, %v822
    %v831 = vrot.slane %v830, 4
    %v832 = vadd.f32 %v830, %v831
    %v833 = vrot.slane %v832, 2
    %v834 = vadd.f32 %v832, %v833
    %v835 = vrot.slane %v834, 1
    %v836 = vadd.f32 %v834, %v835
    %v837 = vrcp.pop 64.0
    %v838 = vmul.f32 64.0, %v837
    %v839 = vsub.f32 1.0, %v838
    %v840 = vmul.f32 %v837, %v839
    %v841 = vadd.f32 %v837, %v840
    %vm842 = vweird.f32 %v837
    %v843 = vsel %vm842, %v837, %v841
    %v844 = vmul.f32 %v836, %v843
    %v845 = vsub.f32 %v801, %v844
    %v846 = vsub.f32 %v804, %v844
    %v847 = vsub.f32 %v807, %v844
    %v848 = vsub.f32 %v810, %v844
    %v849 = vsub.f32 %v813, %v844
    %v850 = vsub.f32 %v816, %v844
    %v851 = vsub.f32 %v819, %v844
    %v852 = vsub.f32 %v822, %v844
    %v853 = vmul.f32 %v845, %v845
    %v854 = vmul.f32 %v846, %v846
    %v855 = vmul.f32 %v847, %v847
    %v856 = vmul.f32 %v848, %v848
    %v857 = vmul.f32 %v849, %v849
    %v858 = vmul.f32 %v850, %v850
    %v859 = vmul.f32 %v851, %v851
    %v860 = vmul.f32 %v852, %v852
    %v861 = vadd.f32 %v853, %v854
    %v862 = vadd.f32 %v861, %v855
    %v863 = vadd.f32 %v862, %v856
    %v864 = vadd.f32 %v863, %v857
    %v865 = vadd.f32 %v864, %v858
    %v866 = vadd.f32 %v865, %v859
    %v867 = vadd.f32 %v866, %v860
    %v868 = vrot.slane %v867, 4
    %v869 = vadd.f32 %v867, %v868
    %v870 = vrot.slane %v869, 2
    %v871 = vadd.f32 %v869, %v870
    %v872 = vrot.slane %v871, 1
    %v873 = vadd.f32 %v871, %v872
    %v874 = vmul.f32 %v873, %v843
    %v875 = vadd.f32 %v874, 1e-05
    %v876 = vrsqrt.pop %v875
    %v877 = vmul.f32 %v876, %v875
    %v878 = vmul.f32 %v877, %v876
    %v879 = vmul.f32 0.5, %v878
    %v880 = vsub.f32 1.5, %v879
    %v881 = vmul.f32 %v876, %v880
    %vm882 = vweird.f32 %v875
    %vm883 = vweird.f32 %v876
    %vm884 = vmor %vm882, %vm883
    %v885 = vsel %vm884, %v876, %v881
    %v886 = vmul.f32 %v845, %v885
    %v887 = vmul.f32 %v846, %v885
    %v888 = vmul.f32 %v847, %v885
    %v889 = vmul.f32 %v848, %v885
    %v890 = vmul.f32 %v849, %v885
    %v891 = vmul.f32 %v850, %v885
    %v892 = vmul.f32 %v851, %v885
    %v893 = vmul.f32 %v852, %v885
    %894 = vset.pattern.permute.xlu0 33
    %895 = vperm.xlu0 %894, %v42
    %v896 = vpop.permute.xlu0 %895
    %898 = vset.pattern.permute.xlu0 33
    %899 = vperm.xlu0 %898, %v43
    %v900 = vpop.permute.xlu0 %899
    %902 = vset.pattern.permute.xlu0 33
    %903 = vperm.xlu0 %902, %v44
    %v904 = vpop.permute.xlu0 %903
    %906 = vset.pattern.permute.xlu0 33
    %907 = vperm.xlu0 %906, %v45
    %v908 = vpop.permute.xlu0 %907
    %910 = vset.pattern.permute.xlu0 33
    %911 = vperm.xlu0 %910, %v46
    %v912 = vpop.permute.xlu0 %911
    %914 = vset.pattern.permute.xlu0 33
    %915 = vperm.xlu0 %914, %v47
    %v916 = vpop.permute.xlu0 %915
    %918 = vset.pattern.permute.xlu0 33
    %919 = vperm.xlu0 %918, %v48
    %v920 = vpop.permute.xlu0 %919
    %922 = vset.pattern.permute.xlu0 33
    %923 = vperm.xlu0 %922, %v49
    %v924 = vpop.permute.xlu0 %923
    %v926 = vmul.f32 %v886, %v896
    %v927 = vmul.f32 %v887, %v900
    %v928 = vmul.f32 %v888, %v904
    %v929 = vmul.f32 %v889, %v908
    %v930 = vmul.f32 %v890, %v912
    %v931 = vmul.f32 %v891, %v916
    %v932 = vmul.f32 %v892, %v920
    %v933 = vmul.f32 %v893, %v924
    %934 = vset.pattern.permute.xlu0 34
    %935 = vperm.xlu0 %934, %v42
    %v936 = vpop.permute.xlu0 %935
    %938 = vset.pattern.permute.xlu0 34
    %939 = vperm.xlu0 %938, %v43
    %v940 = vpop.permute.xlu0 %939
    %942 = vset.pattern.permute.xlu0 34
    %943 = vperm.xlu0 %942, %v44
    %v944 = vpop.permute.xlu0 %943
    %946 = vset.pattern.permute.xlu0 34
    %947 = vperm.xlu0 %946, %v45
    %v948 = vpop.permute.xlu0 %947
    %950 = vset.pattern.permute.xlu0 34
    %951 = vperm.xlu0 %950, %v46
    %v952 = vpop.permute.xlu0 %951
    %954 = vset.pattern.permute.xlu0 34
    %955 = vperm.xlu0 %954, %v47
    %v956 = vpop.permute.xlu0 %955
    %958 = vset.pattern.permute.xlu0 34
    %959 = vperm.xlu0 %958, %v48
    %v960 = vpop.permute.xlu0 %959
    %962 = vset.pattern.permute.xlu0 34
    %963 = vperm.xlu0 %962, %v49
    %v964 = vpop.permute.xlu0 %963
    %v966 = vadd.f32 %v926, %v936
    %v967 = vadd.f32 %v927, %v940
    %v968 = vadd.f32 %v928, %v944
    %v969 = vadd.f32 %v929, %v948
    %v970 = vadd.f32 %v930, %v952
    %v971 = vadd.f32 %v931, %v956
    %v972 = vadd.f32 %v932, %v960
    %v973 = vadd.f32 %v933, %v964
    %v974 = vxor.u32 %v966, 2147483648
    %v975 = vxor.u32 %v967, 2147483648
    %v976 = vxor.u32 %v968, 2147483648
    %v977 = vxor.u32 %v969, 2147483648
    %v978 = vxor.u32 %v970, 2147483648
    %v979 = vxor.u32 %v971, 2147483648
    %v980 = vxor.u32 %v972, 2147483648
    %v981 = vxor.u32 %v973, 2147483648
    %v982 = vmul.f32 %v974, 1.442695
    %v983 = vpow.pop %v982
    %v984 = vmul.f32 %v975, 1.442695
    %v985 = vpow.pop %v984
    %v986 = vmul.f32 %v976, 1.442695
    %v987 = vpow.pop %v986
    %v988 = vmul.f32 %v977, 1.442695
    %v989 = vpow.pop %v988
    %v990 = vmul.f32 %v978, 1.442695
    %v991 = vpow.pop %v990
    %v992 = vmul.f32 %v979, 1.442695
    %v993 = vpow.pop %v992
    %v994 = vmul.f32 %v980, 1.442695
    %v995 = vpow.pop %v994
    %v996 = vmul.f32 %v981, 1.442695
    %v997 = vpow.pop %v996
    %v998 = vadd.f32 %v983, 1.0
    %v999 = vadd.f32 %v985, 1.0
    %v1000 = vadd.f32 %v987, 1.0
    %v1001 = vadd.f32 %v989, 1.0
    %v1002 = vadd.f32 %v991, 1.0
    %v1003 = vadd.f32 %v993, 1.0
    %v1004 = vadd.f32 %v995, 1.0
    %v1005 = vadd.f32 %v997, 1.0
    %v1006 = vrcp.pop %v998
    %v1007 = vmul.f32 %v998, %v1006
    %v1008 = vsub.f32 1.0, %v1007
    %v1009 = vmul.f32 %v1006, %v1008
    %v1010 = vadd.f32 %v1006, %v1009
    %vm1011 = vweird.f32 %v998
    %vm1012 = vweird.f32 %v1006
    %vm1013 = vmor %vm1011, %vm1012
    %v1014 = vsel %vm1013, %v1006, %v1010
    %v1015 = vand.u32 2147483647, %v998
    %vm1016 = vcmp.eq.f32.partialorder %v1015, 8.507059e+37
    %v1017 = vand.u32 %v998, 2147483648
    %v1018 = vor.u32 1.1754944e-38, %v1017
    %v1019 = vsel %vm1016, %v1018, %v1014
    %v1020 = vmul.f32 1.0, %v1019
    %v1021 = vrcp.pop %v999
    %v1022 = vmul.f32 %v999, %v1021
    %v1023 = vsub.f32 1.0, %v1022
    %v1024 = vmul.f32 %v1021, %v1023
    %v1025 = vadd.f32 %v1021, %v1024
    %vm1026 = vweird.f32 %v999
    %vm1027 = vweird.f32 %v1021
    %vm1028 = vmor %vm1026, %vm1027
    %v1029 = vsel %vm1028, %v1021, %v1025
    %v1030 = vand.u32 2147483647, %v999
    %vm1031 = vcmp.eq.f32.partialorder %v1030, 8.507059e+37
    %v1032 = vand.u32 %v999, 2147483648
    %v1033 = vor.u32 1.1754944e-38, %v1032
    %v1034 = vsel %vm1031, %v1033, %v1029
    %v1035 = vmul.f32 1.0, %v1034
    %v1036 = vrcp.pop %v1000
    %v1037 = vmul.f32 %v1000, %v1036
    %v1038 = vsub.f32 1.0, %v1037
    %v1039 = vmul.f32 %v1036, %v1038
    %v1040 = vadd.f32 %v1036, %v1039
    %vm1041 = vweird.f32 %v1000
    %vm1042 = vweird.f32 %v1036
    %vm1043 = vmor %vm1041, %vm1042
    %v1044 = vsel %vm1043, %v1036, %v1040
    %v1045 = vand.u32 2147483647, %v1000
    %vm1046 = vcmp.eq.f32.partialorder %v1045, 8.507059e+37
    %v1047 = vand.u32 %v1000, 2147483648
    %v1048 = vor.u32 1.1754944e-38, %v1047
    %v1049 = vsel %vm1046, %v1048, %v1044
    %v1050 = vmul.f32 1.0, %v1049
    %v1051 = vrcp.pop %v1001
    %v1052 = vmul.f32 %v1001, %v1051
    %v1053 = vsub.f32 1.0, %v1052
    %v1054 = vmul.f32 %v1051, %v1053
    %v1055 = vadd.f32 %v1051, %v1054
    %vm1056 = vweird.f32 %v1001
    %vm1057 = vweird.f32 %v1051
    %vm1058 = vmor %vm1056, %vm1057
    %v1059 = vsel %vm1058, %v1051, %v1055
    %v1060 = vand.u32 2147483647, %v1001
    %vm1061 = vcmp.eq.f32.partialorder %v1060, 8.507059e+37
    %v1062 = vand.u32 %v1001, 2147483648
    %v1063 = vor.u32 1.1754944e-38, %v1062
    %v1064 = vsel %vm1061, %v1063, %v1059
    %v1065 = vmul.f32 1.0, %v1064
    %v1066 = vrcp.pop %v1002
    %v1067 = vmul.f32 %v1002, %v1066
    %v1068 = vsub.f32 1.0, %v1067
    %v1069 = vmul.f32 %v1066, %v1068
    %v1070 = vadd.f32 %v1066, %v1069
    %vm1071 = vweird.f32 %v1002
    %vm1072 = vweird.f32 %v1066
    %vm1073 = vmor %vm1071, %vm1072
    %v1074 = vsel %vm1073, %v1066, %v1070
    %v1075 = vand.u32 2147483647, %v1002
    %vm1076 = vcmp.eq.f32.partialorder %v1075, 8.507059e+37
    %v1077 = vand.u32 %v1002, 2147483648
    %v1078 = vor.u32 1.1754944e-38, %v1077
    %v1079 = vsel %vm1076, %v1078, %v1074
    %v1080 = vmul.f32 1.0, %v1079
    %v1081 = vrcp.pop %v1003
    %v1082 = vmul.f32 %v1003, %v1081
    %v1083 = vsub.f32 1.0, %v1082
    %v1084 = vmul.f32 %v1081, %v1083
    %v1085 = vadd.f32 %v1081, %v1084
    %vm1086 = vweird.f32 %v1003
    %vm1087 = vweird.f32 %v1081
    %vm1088 = vmor %vm1086, %vm1087
    %v1089 = vsel %vm1088, %v1081, %v1085
    %v1090 = vand.u32 2147483647, %v1003
    %vm1091 = vcmp.eq.f32.partialorder %v1090, 8.507059e+37
    %v1092 = vand.u32 %v1003, 2147483648
    %v1093 = vor.u32 1.1754944e-38, %v1092
    %v1094 = vsel %vm1091, %v1093, %v1089
    %v1095 = vmul.f32 1.0, %v1094
    %v1096 = vrcp.pop %v1004
    %v1097 = vmul.f32 %v1004, %v1096
    %v1098 = vsub.f32 1.0, %v1097
    %v1099 = vmul.f32 %v1096, %v1098
    %v1100 = vadd.f32 %v1096, %v1099
    %vm1101 = vweird.f32 %v1004
    %vm1102 = vweird.f32 %v1096
    %vm1103 = vmor %vm1101, %vm1102
    %v1104 = vsel %vm1103, %v1096, %v1100
    %v1105 = vand.u32 2147483647, %v1004
    %vm1106 = vcmp.eq.f32.partialorder %v1105, 8.507059e+37
    %v1107 = vand.u32 %v1004, 2147483648
    %v1108 = vor.u32 1.1754944e-38, %v1107
    %v1109 = vsel %vm1106, %v1108, %v1104
    %v1110 = vmul.f32 1.0, %v1109
    %v1111 = vrcp.pop %v1005
    %v1112 = vmul.f32 %v1005, %v1111
    %v1113 = vsub.f32 1.0, %v1112
    %v1114 = vmul.f32 %v1111, %v1113
    %v1115 = vadd.f32 %v1111, %v1114
    %vm1116 = vweird.f32 %v1005
    %vm1117 = vweird.f32 %v1111
    %vm1118 = vmor %vm1116, %vm1117
    %v1119 = vsel %vm1118, %v1111, %v1115
    %v1120 = vand.u32 2147483647, %v1005
    %vm1121 = vcmp.eq.f32.partialorder %v1120, 8.507059e+37
    %v1122 = vand.u32 %v1005, 2147483648
    %v1123 = vor.u32 1.1754944e-38, %v1122
    %v1124 = vsel %vm1121, %v1123, %v1119
    %v1125 = vmul.f32 1.0, %v1124
    %v1126 = vmul.f32 %v966, %v1020
    %v1127 = vmul.f32 %v967, %v1035
    %v1128 = vmul.f32 %v968, %v1050
    %v1129 = vmul.f32 %v969, %v1065
    %v1130 = vmul.f32 %v970, %v1080
    %v1131 = vmul.f32 %v971, %v1095
    %v1132 = vmul.f32 %v972, %v1110
    %v1133 = vmul.f32 %v973, %v1125
    %1134 = vset.pattern.permute.xlu0 64
    %1135 = vperm.xlu0 %1134, %v50
    %v1136 = vpop.permute.xlu0 %1135
    %1138 = vset.pattern.permute.xlu0 64
    %1139 = vperm.xlu0 %1138, %v51
    %v1140 = vpop.permute.xlu0 %1139
    %1142 = vset.pattern.permute.xlu0 64
    %1143 = vperm.xlu0 %1142, %v52
    %v1144 = vpop.permute.xlu0 %1143
    %1146 = vset.pattern.permute.xlu0 64
    %1147 = vperm.xlu0 %1146, %v53
    %v1148 = vpop.permute.xlu0 %1147
    %vm1150 = vcmask 523264
    %v1151 = vsel %vm1150, %v50, 0
    %v1153 = vsel %vm1150, %v51, 0
    %v1155 = vsel %vm1150, %v52, 0
    %v1157 = vsel %vm1150, %v53, 0
    %1159 = vmatpush.msra.mxu0 0.0
    %1160 = vmatpush.msra.mxu0 0.0
    %1161 = vmatpush.msra.mxu0 0.0
    %1162 = vmatpush.msra.mxu0 0.0
    %1163 = vmatpush.msra.mxu0 0.0
    %1164 = vmatpush.msra.mxu0 0.0
    %1165 = vmatpush.msra.mxu0 0.0
    %1166 = vmatpush.msra.mxu0 0.0
    %1167 = vmatpush.msra.mxu0 %v1133
    %1168 = vmatpush.msra.mxu0 %v1132
    %1169 = vmatpush.msra.mxu0 %v1131
    %1170 = vmatpush.msra.mxu0 %v1130
    %1171 = vmatpush.msra.mxu0 %v1129
    %1172 = vmatpush.msra.mxu0 %v1128
    %1173 = vmatpush.msra.mxu0 %v1127
    %1174 = vmatpush.msra.mxu0 %v1126
    %1175 = vmatmul.f32.gmra.mxu0 %v1151
    %v1176 = vpop.f32.mrf.mxu0
    %v1177 = vadd.f32 %v1136, %v1176
    %1178 = vmatmul.f32.gmra.mxu0 %v1153
    %v1179 = vpop.f32.mrf.mxu0
    %v1180 = vadd.f32 %v1140, %v1179
    %1181 = vmatmul.f32.gmra.mxu0 %v1155
    %v1182 = vpop.f32.mrf.mxu0
    %v1183 = vadd.f32 %v1144, %v1182
    %1184 = vmatmul.f32.gmra.mxu0 %v1157
    %v1185 = vpop.f32.mrf.mxu0
    %v1186 = vadd.f32 %v1148, %v1185
    %1187 = vdwg.mxu0
    %v1188 = vadd.f32 %v1177, %v1180
    %v1189 = vadd.f32 %v1188, %v1183
    %v1190 = vadd.f32 %v1189, %v1186
    %v1191 = vrot.slane %v1190, 4
    %v1192 = vadd.f32 %v1190, %v1191
    %v1193 = vrot.slane %v1192, 2
    %v1194 = vadd.f32 %v1192, %v1193
    %v1195 = vrot.slane %v1194, 1
    %v1196 = vadd.f32 %v1194, %v1195
    %v1197 = vrcp.pop 32.0
    %v1198 = vmul.f32 32.0, %v1197
    %v1199 = vsub.f32 1.0, %v1198
    %v1200 = vmul.f32 %v1197, %v1199
    %v1201 = vadd.f32 %v1197, %v1200
    %vm1202 = vweird.f32 %v1197
    %v1203 = vsel %vm1202, %v1197, %v1201
    %v1204 = vmul.f32 %v1196, %v1203
    %v1205 = vsub.f32 %v1177, %v1204
    %v1206 = vsub.f32 %v1180, %v1204
    %v1207 = vsub.f32 %v1183, %v1204
    %v1208 = vsub.f32 %v1186, %v1204
    %v1209 = vmul.f32 %v1205, %v1205
    %v1210 = vmul.f32 %v1206, %v1206
    %v1211 = vmul.f32 %v1207, %v1207
    %v1212 = vmul.f32 %v1208, %v1208
    %v1213 = vadd.f32 %v1209, %v1210
    %v1214 = vadd.f32 %v1213, %v1211
    %v1215 = vadd.f32 %v1214, %v1212
    %v1216 = vrot.slane %v1215, 4
    %v1217 = vadd.f32 %v1215, %v1216
    %v1218 = vrot.slane %v1217, 2
    %v1219 = vadd.f32 %v1217, %v1218
    %v1220 = vrot.slane %v1219, 1
    %v1221 = vadd.f32 %v1219, %v1220
    %v1222 = vmul.f32 %v1221, %v1203
    %v1223 = vadd.f32 %v1222, 1e-05
    %v1224 = vrsqrt.pop %v1223
    %v1225 = vmul.f32 %v1224, %v1223
    %v1226 = vmul.f32 %v1225, %v1224
    %v1227 = vmul.f32 0.5, %v1226
    %v1228 = vsub.f32 1.5, %v1227
    %v1229 = vmul.f32 %v1224, %v1228
    %vm1230 = vweird.f32 %v1223
    %vm1231 = vweird.f32 %v1224
    %vm1232 = vmor %vm1230, %vm1231
    %v1233 = vsel %vm1232, %v1224, %v1229
    %v1234 = vmul.f32 %v1205, %v1233
    %v1235 = vmul.f32 %v1206, %v1233
    %v1236 = vmul.f32 %v1207, %v1233
    %v1237 = vmul.f32 %v1208, %v1233
    %1238 = vset.pattern.permute.xlu0 65
    %1239 = vperm.xlu0 %1238, %v50
    %v1240 = vpop.permute.xlu0 %1239
    %1242 = vset.pattern.permute.xlu0 65
    %1243 = vperm.xlu0 %1242, %v51
    %v1244 = vpop.permute.xlu0 %1243
    %1246 = vset.pattern.permute.xlu0 65
    %1247 = vperm.xlu0 %1246, %v52
    %v1248 = vpop.permute.xlu0 %1247
    %1250 = vset.pattern.permute.xlu0 65
    %1251 = vperm.xlu0 %1250, %v53
    %v1252 = vpop.permute.xlu0 %1251
    %v1254 = vmul.f32 %v1234, %v1240
    %v1255 = vmul.f32 %v1235, %v1244
    %v1256 = vmul.f32 %v1236, %v1248
    %v1257 = vmul.f32 %v1237, %v1252
    %1258 = vset.pattern.permute.xlu0 66
    %1259 = vperm.xlu0 %1258, %v50
    %v1260 = vpop.permute.xlu0 %1259
    %1262 = vset.pattern.permute.xlu0 66
    %1263 = vperm.xlu0 %1262, %v51
    %v1264 = vpop.permute.xlu0 %1263
    %1266 = vset.pattern.permute.xlu0 66
    %1267 = vperm.xlu0 %1266, %v52
    %v1268 = vpop.permute.xlu0 %1267
    %1270 = vset.pattern.permute.xlu0 66
    %1271 = vperm.xlu0 %1270, %v53
    %v1272 = vpop.permute.xlu0 %1271
    %v1274 = vadd.f32 %v1254, %v1260
    %v1275 = vadd.f32 %v1255, %v1264
    %v1276 = vadd.f32 %v1256, %v1268
    %v1277 = vadd.f32 %v1257, %v1272
    %1278 = vst [vmem:[#allocation7] sm:$0xff] %v1274
    %1279 = vst [vmem:[#allocation7 + $0x8] sm:$0xff] %v1275
    %1280 = vst [vmem:[#allocation7 + $0x10] sm:$0xff] %v1276
    %1281 = vst [vmem:[#allocation7 + $0x18] sm:$0xff] %v1277
    // Predicated region
    $region18: #{tpu_custom_call.1} parent=1 // pred_check
      _
    $region19: #{tpu_custom_call.1} parent=1 // pred_check_branch
      %1283 = sbr.rel (0) target = $region21
    $region20: #{tpu_custom_call.1} parent=1 // pred_region
      %1285 = vsyncadd [#allocation4], 0
      %s1286 = sshll.u32 [#allocation7], 4
      %s1287 = int_to_ptr.vmem [resolvable:$true] %s1286
      %s1288 = sshll.u32 %s2, 4
      %s1289 = int_to_ptr.hbm [resolvable:$true] %s1288
      %1294 = dma.vmem_to_hbm [thread:$0]  %s1287, 512, %s1289, [#allocation4], 128, 128, 8
    $region21: #{tpu_custom_call.1} parent=1 // pred_fallthru
      _
    // Predicated region
    $region22: #{tpu_custom_call.1} parent=1 // pred_check
      _
    $region23: #{tpu_custom_call.1} parent=1 // pred_check_branch
      %1296 = sbr.rel (0) target = $region25
    $region24: #{tpu_custom_call.1} parent=1 // pred_region
      %1298 = dma.done [#allocation4], 512
    $region25: #{tpu_custom_call.1} parent=1 // pred_fallthru
      _
    %1299 = vsyncpa [#allocation3], 1
    %1300 = vsyncpa [#allocation6], 1
    %1301 = vsyncpa [#allocation4], 1

</llo_original>
